<compile_context>
chip_gen: v7x
topology: tpu7x:2x2x1
jax: 0.10.0
libtpu: 0.0.40
codegen_flags: <defaults>
</compile_context>

<pallas_src>
import functools

import jax
import jax.numpy as jnp
from jax.experimental import pallas as pl
from jax.experimental.pallas import tpu as pltpu


# ---------------------------------------------------------------------------
# Kernels
# ---------------------------------------------------------------------------

def _crop_fast_kernel(x_ref, o_ref):
    # Fast (lane-dense) path: quadrant selection lives entirely in the grid /
    # index_maps, so the body is a single full-tile copy.
    #   x_ref: (TN, TH, W/2)      -- one quadrant tile of the input
    #   o_ref: (1, TN, TH, W/2)   -- matching tile of the output quadrant
    o_ref[0] = x_ref[...]


def _crop_general_kernel(x_ref, o_ref, *, h2, w2):
    # General path (narrow / irregular shapes): whole-image blocks, so the
    # last two block dims always equal the full array dims (no (8,128)
    # constraint for any H/W/dtype).  Four direct slab stores.
    #   x_ref: (TN, H, W)
    #   o_ref: (4, TN, H/2, W/2)  -- [tl, tr, bl, br]
    o_ref[0] = x_ref[:, :h2, :w2]
    o_ref[1] = x_ref[:, :h2, w2:]
    o_ref[2] = x_ref[:, h2:, :w2]
    o_ref[3] = x_ref[:, h2:, w2:]


# ---------------------------------------------------------------------------
# Helpers
# ---------------------------------------------------------------------------

def _sublane_quantum(dtype):
    # f32 -> 8 rows, bf16/f16 -> 16, int8/fp8 -> 32 (sublane packing).
    return {4: 8, 2: 16, 1: 32}.get(jnp.dtype(dtype).itemsize, 8)


def _largest_divisor(n, *, step, cap):
    """Largest d with n % d == 0, d % step == 0, step <= d <= cap."""
    cap = min(cap, n)
    best = None
    d = step
    while d <= cap:
        if n % d == 0:
            best = d
        d += step
    return best


# ---------------------------------------------------------------------------
# Wrapper
# ---------------------------------------------------------------------------

def crop_pallas(x, *, block_bytes=4 * 1024 * 1024):
    """cropimage(x): (B, C, H, W) -> (4B, C, H/2, W/2)."""
    b, c, h, w = x.shape
    assert h % 2 == 0 and w % 2 == 0, "H and W must be even"
    h2, w2 = h // 2, w // 2
    n = b * c
    itemsize = jnp.dtype(x.dtype).itemsize
    quantum = _sublane_quantum(x.dtype)

    # Merge batch and channel (free reshape) -> better tile divisors and more
    # parallel grid iterations.
    x3 = x.reshape(n, h, w)

    # Pure HBM-traffic hint for XLA's scheduler.
    cost = pl.CostEstimate(flops=0, transcendentals=0,
                           bytes_accessed=2 * int(x.size) * itemsize)

    if (w2 % 128 == 0) and (h2 % quantum == 0):
        # ---------------- fast path: lane-dense full-tile copy --------------
        row_bytes = w2 * itemsize
        max_rows = max(quantum, (block_bytes // row_bytes) // quantum * quantum)
        th = _largest_divisor(h2, step=quantum, cap=max_rows)
        strip_bytes = th * row_bytes
        tn = _largest_divisor(n, step=1, cap=max(1, block_bytes // strip_bytes))
        n_nblk, n_hblk = n // tn, h2 // th

        grid = (4, n_nblk, n_hblk)  # (quadrant, merged-BC block, H/2 block)
        block_in = tn * th * w2 * itemsize
        # Double-buffered in+out ~= 4 * block_in; keep headroom, stay under
        # v7x's 64 MiB physical VMEM with the default block_bytes.
        vmem_limit = int(max(32 << 20, 5 * block_in + (4 << 20)))

        out4 = pl.pallas_call(
            _crop_fast_kernel,
            out_shape=jax.ShapeDtypeStruct((4, n, h2, w2), x.dtype),
            grid_spec=pltpu.PrefetchScalarGridSpec(
                num_scalar_prefetch=0,
                grid=grid,
                in_specs=[
                    # Quadrant q: rows [(q//2)*h2 + hb*th, +th),
                    # cols [(q%2)*w2, +w2) of merged image block nb.
                    pl.BlockSpec(
                        (tn, th, w2),
                        lambda q, nb, hb: (nb, (q // 2) * n_hblk + hb, q % 2)),
                ],
                out_specs=pl.BlockSpec(
                    (1, tn, th, w2),
                    lambda q, nb, hb: (q, nb, hb, 0)),
            ),
            compiler_params=pltpu.CompilerParams(
                dimension_semantics=("parallel", "parallel", "parallel"),
                vmem_limit_bytes=vmem_limit),
            cost_estimate=cost,
        )(x3)
    else:
        # ------------- general path: whole-image blocks, in-kernel split ----
        img_bytes = h * w * itemsize
        tn = _largest_divisor(n, step=1, cap=max(1, block_bytes // img_bytes))
        n_nblk = n // tn
        vmem_limit = int(max(32 << 20, 4 * tn * img_bytes + (8 << 20)))

        out4 = pl.pallas_call(
            functools.partial(_crop_general_kernel, h2=h2, w2=w2),
            out_shape=jax.ShapeDtypeStruct((4, n, h2, w2), x.dtype),
            grid_spec=pltpu.PrefetchScalarGridSpec(
                num_scalar_prefetch=0,
                grid=(n_nblk,),
                in_specs=[pl.BlockSpec((tn, h, w), lambda nb: (nb, 0, 0))],
                out_specs=pl.BlockSpec((4, tn, h2, w2),
                                       lambda nb: (0, nb, 0, 0)),
            ),
            compiler_params=pltpu.CompilerParams(
                dimension_semantics=("parallel",),
                vmem_limit_bytes=vmem_limit),
            cost_estimate=cost,
        )(x3)

    # Free reshape: (4, B*C, H/2, W/2) -> (4B, C, H/2, W/2), quadrant-major,
    # matching torch.cat((tl, tr, bl, br), dim=0).
    return out4.reshape(4 * b, c, h2, w2)


# ---------------------------------------------------------------------------
# Reference & test
# ---------------------------------------------------------------------------

def _crop_ref(x):
    """Pure-JAX reference mirroring the PyTorch cropimage()."""
    h, w = x.shape[2], x.shape[3]
    tl = x[:, :, : h // 2, : w // 2]
    tr = x[:, :, : h // 2, w // 2:]
    bl = x[:, :, h // 2:, : w // 2]
    br = x[:, :, h // 2:, w // 2:]
    return jnp.concatenate([tl, tr, bl, br], axis=0)


if __name__ == "__main__":
    key = jax.random.PRNGKey(0)
    k1, k2 = jax.random.split(key)

    # Required small shape (exercises the general path: W/2 = 8 < 128 lanes).
    B, C, H, W = 2, 4, 16, 16
    x_small = jax.random.normal(k1, (B, C, H, W), dtype=jnp.float32)
    out_small = jax.block_until_ready(crop_pallas(x_small))
    assert out_small.shape == (4 * B, C, H // 2, W // 2), out_small.shape
    assert out_small.dtype == x_small.dtype
    assert jnp.array_equal(out_small, _crop_ref(x_small)), "mismatch (general)"

    # Lane-dense shape (exercises the fast path: W/2 = 128).
    B2, C2, H2, W2 = 1, 2, 16, 256
    x_big = jax.random.normal(k2, (B2, C2, H2, W2), dtype=jnp.float32)
    out_big = jax.block_until_ready(crop_pallas(x_big))
    assert out_big.shape == (4 * B2, C2, H2 // 2, W2 // 2), out_big.shape
    assert jnp.array_equal(out_big, _crop_ref(x_big)), "mismatch (fast)"

    print("KERNEL_OK")
</pallas_src>

<mosaic_0001>
module attributes {stable_mosaic.version = 11 : i64} {
  func.func @_crop_general_kernel(%arg0: i32, %arg1: memref<8x16x16xf32, #tpu.memory_space<vmem>>, %arg2: memref<4x8x8x8xf32, #tpu.memory_space<vmem>>) attributes {dimension_semantics = [#tpu.dimension_semantics<parallel>], iteration_bounds = array<i64: 1>, scalar_prefetch = 0 : i64, scratch_operands = 0 : i64, tpu.core_type = #tpu.core_type<tc>, window_params = [{transform_indices = @transform_0, window_bounds = array<i64: 8, 16, 16>}, {transform_indices = @transform_1, window_bounds = array<i64: 4, 8, 8, 8>}]} {
    %c0 = arith.constant 0 : index
    %c0_0 = arith.constant 0 : index
    %c0_1 = arith.constant 0 : index
    %0 = vector.load %arg1[%c0, %c0_0, %c0_1] : memref<8x16x16xf32, #tpu.memory_space<vmem>>, vector<8x8x8xf32>
    %c0_2 = arith.constant 0 : index
    %c0_3 = arith.constant 0 : index
    %c0_4 = arith.constant 0 : index
    %c0_5 = arith.constant 0 : index
    %1 = vector.load %arg2[%c0_2, %c0_3, %c0_4, %c0_5] : memref<4x8x8x8xf32, #tpu.memory_space<vmem>>, vector<1x8x8x8xf32>
    %2 = vector.shape_cast %1 : vector<1x8x8x8xf32> to vector<8x8x8xf32>
    %3 = vector.shape_cast %0 : vector<8x8x8xf32> to vector<1x8x8x8xf32>
    tpu.vector_store %arg2[%c0_2, %c0_3, %c0_4, %c0_5], %3 {strides = array<i32>} : memref<4x8x8x8xf32, #tpu.memory_space<vmem>>, vector<1x8x8x8xf32>,
    %c0_6 = arith.constant 0 : index
    %c0_7 = arith.constant 0 : index
    %c8 = arith.constant 8 : index
    %4 = vector.load %arg1[%c0_6, %c0_7, %c8] : memref<8x16x16xf32, #tpu.memory_space<vmem>>, vector<8x8x8xf32>
    %c1 = arith.constant 1 : index
    %c0_8 = arith.constant 0 : index
    %c0_9 = arith.constant 0 : index
    %c0_10 = arith.constant 0 : index
    %5 = vector.load %arg2[%c1, %c0_8, %c0_9, %c0_10] : memref<4x8x8x8xf32, #tpu.memory_space<vmem>>, vector<1x8x8x8xf32>
    %6 = vector.shape_cast %5 : vector<1x8x8x8xf32> to vector<8x8x8xf32>
    %7 = vector.shape_cast %4 : vector<8x8x8xf32> to vector<1x8x8x8xf32>
    tpu.vector_store %arg2[%c1, %c0_8, %c0_9, %c0_10], %7 {strides = array<i32>} : memref<4x8x8x8xf32, #tpu.memory_space<vmem>>, vector<1x8x8x8xf32>,
    %c0_11 = arith.constant 0 : index
    %c8_12 = arith.constant 8 : index
    %c0_13 = arith.constant 0 : index
    %8 = vector.load %arg1[%c0_11, %c8_12, %c0_13] : memref<8x16x16xf32, #tpu.memory_space<vmem>>, vector<8x8x8xf32>
    %c2 = arith.constant 2 : index
    %c0_14 = arith.constant 0 : index
    %c0_15 = arith.constant 0 : index
    %c0_16 = arith.constant 0 : index
    %9 = vector.load %arg2[%c2, %c0_14, %c0_15, %c0_16] : memref<4x8x8x8xf32, #tpu.memory_space<vmem>>, vector<1x8x8x8xf32>
    %10 = vector.shape_cast %9 : vector<1x8x8x8xf32> to vector<8x8x8xf32>
    %11 = vector.shape_cast %8 : vector<8x8x8xf32> to vector<1x8x8x8xf32>
    tpu.vector_store %arg2[%c2, %c0_14, %c0_15, %c0_16], %11 {strides = array<i32>} : memref<4x8x8x8xf32, #tpu.memory_space<vmem>>, vector<1x8x8x8xf32>,
    %c0_17 = arith.constant 0 : index
    %c8_18 = arith.constant 8 : index
    %c8_19 = arith.constant 8 : index
    %12 = vector.load %arg1[%c0_17, %c8_18, %c8_19] : memref<8x16x16xf32, #tpu.memory_space<vmem>>, vector<8x8x8xf32>
    %c3 = arith.constant 3 : index
    %c0_20 = arith.constant 0 : index
    %c0_21 = arith.constant 0 : index
    %c0_22 = arith.constant 0 : index
    %13 = vector.load %arg2[%c3, %c0_20, %c0_21, %c0_22] : memref<4x8x8x8xf32, #tpu.memory_space<vmem>>, vector<1x8x8x8xf32>
    %14 = vector.shape_cast %13 : vector<1x8x8x8xf32> to vector<8x8x8xf32>
    %15 = vector.shape_cast %12 : vector<8x8x8xf32> to vector<1x8x8x8xf32>
    tpu.vector_store %arg2[%c3, %c0_20, %c0_21, %c0_22], %15 {strides = array<i32>} : memref<4x8x8x8xf32, #tpu.memory_space<vmem>>, vector<1x8x8x8xf32>,
    return
  }
  func.func @transform_0(%arg0: i32) -> (i32, i32, i32) {
    %c0_i32 = arith.constant 0 : i32
    %c0_i32_0 = arith.constant 0 : i32
    %c0_i32_1 = arith.constant 0 : i32
    return %arg0, %c0_i32, %c0_i32_0 : i32, i32, i32
  }
  func.func @transform_1(%arg0: i32) -> (i32, i32, i32, i32) {
    %c0_i32 = arith.constant 0 : i32
    %c0_i32_0 = arith.constant 0 : i32
    %c0_i32_1 = arith.constant 0 : i32
    %c0_i32_2 = arith.constant 0 : i32
    return %c0_i32, %arg0, %c0_i32_0, %c0_i32_1 : i32, i32, i32, i32
  }
}

</mosaic_0001>

<llo_original>
// kernel: tpu_custom_call.1
$region0: #{tpu_custom_call.1}
  #allocation0 [shape = 'u32[]', space=smem, size = 0x4, offset = 0x4, fixed_abs, tag = 'smem constant byte address 0x4 - core index']
  #allocation1 [shape = 'u32[144,128]{1,0:T(1,128)}', space=vmem, size = 0x12000, scoped, tag = 'internal scratch']
  %s0 = inlined_call_operand.hbm [shape: f32[8,16,16], index: 0, kind: input, shape index: {}]
  %s1 = inlined_call_operand.hbm [shape: f32[4,8,8,8], index: 1, kind: output, shape index: {}]
  %s2 = sld [smem:[#allocation0]]
  $region18: #{tpu_custom_call.1} parent=0
    _
  %s4 = ssub.s32 1, %s2
  %s5 = scalar_select 0, %s4, %s2
  $region1: #{tpu_custom_call.1} parent=0
    #allocation2 [shape = 'u8[65536]{0}', space=vmem, size = 0x10000, scoped, tag = 'input window, operand 0, single buffered']
    #allocation3 [shape = 's32[1]{0}', space=sflag, size = 0x4, scoped, tag = 'scoped memory for tpu_custom_call.1']
    #allocation4 [shape = 's32[1]{0}', space=sflag, size = 0x4, scoped, tag = 'scoped memory for tpu_custom_call.1']
    #allocation5 [shape = 'u8[131072]{0}', space=vmem, size = 0x20000, scoped, tag = 'output window, operand 0, single buffered']
    %6 = vsyncpa [#allocation3], 0
    %7 = vsyncpa [#allocation4], 0
    // Predicated region
    $region2: #{tpu_custom_call.1} parent=1 // pred_check
      _
    $region3: #{tpu_custom_call.1} parent=1 // pred_check_branch
      %9 = sbr.rel (0) target = $region5
    $region4: #{tpu_custom_call.1} parent=1 // pred_region
      %s11 = ssub.s32 2048, 2048
      %12 = vsyncadd [#allocation3], %s11
      %s13 = sshll.u32 [#allocation2], 4
      %s14 = int_to_ptr.vmem [resolvable:$true] %s13
      %19 = dma.hbm_to_vmem [thread:$0]  %s0, 2048, %s14, [#allocation3], 128, 128, 8
    $region5: #{tpu_custom_call.1} parent=1 // pred_fallthru
      _
    // Predicated region
    $region6: #{tpu_custom_call.1} parent=1 // pred_check
      _
    $region7: #{tpu_custom_call.1} parent=1 // pred_check_branch
      %21 = sbr.rel (0) target = $region9
    $region8: #{tpu_custom_call.1} parent=1 // pred_region
      %22 = dma.done [#allocation3], 2048
    $region9: #{tpu_custom_call.1} parent=1 // pred_fallthru
      _
    %v23 = vld [vmem:[#allocation2] sm:$0xff]
    %v24 = vld [vmem:[#allocation2 + $0x10] sm:$0xff]
    %v25 = vld [vmem:[#allocation2 + $0x20] sm:$0xff]
    %v26 = vld [vmem:[#allocation2 + $0x30] sm:$0xff]
    %v27 = vld [vmem:[#allocation2 + $0x40] sm:$0xff]
    %v28 = vld [vmem:[#allocation2 + $0x50] sm:$0xff]
    %v29 = vld [vmem:[#allocation2 + $0x60] sm:$0xff]
    %v30 = vld [vmem:[#allocation2 + $0x70] sm:$0xff]
    %vm31 = vcmask 64512
    %32 = vst.msk [vmem:[#allocation5] sm:$0xff] %vm31, %v23
    %33 = vst.msk [vmem:[#allocation5 + $0x8] sm:$0xff] %vm31, %v24
    %34 = vst.msk [vmem:[#allocation5 + $0x10] sm:$0xff] %vm31, %v25
    %35 = vst.msk [vmem:[#allocation5 + $0x18] sm:$0xff] %vm31, %v26
    %36 = vst.msk [vmem:[#allocation5 + $0x20] sm:$0xff] %vm31, %v27
    %37 = vst.msk [vmem:[#allocation5 + $0x28] sm:$0xff] %vm31, %v28
    %38 = vst.msk [vmem:[#allocation5 + $0x30] sm:$0xff] %vm31, %v29
    %39 = vst.msk [vmem:[#allocation5 + $0x38] sm:$0xff] %vm31, %v30
    %v40 = vld [vmem:[#allocation2] sm:$0xff]
    %v41 = vld [vmem:[#allocation2 + $0x10] sm:$0xff]
    %v42 = vld [vmem:[#allocation2 + $0x20] sm:$0xff]
    %v43 = vld [vmem:[#allocation2 + $0x30] sm:$0xff]
    %v44 = vld [vmem:[#allocation2 + $0x40] sm:$0xff]
    %v45 = vld [vmem:[#allocation2 + $0x50] sm:$0xff]
    %v46 = vld [vmem:[#allocation2 + $0x60] sm:$0xff]
    %v47 = vld [vmem:[#allocation2 + $0x70] sm:$0xff]
    %56 = vrot.lane.b32.xlu0 %v40, 120
    %v57 = vpop.permute.xlu0 %56
    %58 = vrot.lane.b32.xlu0 %v41, 120
    %v59 = vpop.permute.xlu0 %58
    %60 = vrot.lane.b32.xlu0 %v42, 120
    %v61 = vpop.permute.xlu0 %60
    %62 = vrot.lane.b32.xlu0 %v43, 120
    %v63 = vpop.permute.xlu0 %62
    %64 = vrot.lane.b32.xlu0 %v44, 120
    %v65 = vpop.permute.xlu0 %64
    %66 = vrot.lane.b32.xlu0 %v45, 120
    %v67 = vpop.permute.xlu0 %66
    %68 = vrot.lane.b32.xlu0 %v46, 120
    %v69 = vpop.permute.xlu0 %68
    %70 = vrot.lane.b32.xlu0 %v47, 120
    %v71 = vpop.permute.xlu0 %70
    %s80 = scalar_lea.vmem [#allocation5], 64
    %81 = vst.msk [vmem:[%s80] sm:$0xff] %vm31, %v57
    %82 = vst.msk [vmem:[%s80 + $0x8] sm:$0xff] %vm31, %v59
    %83 = vst.msk [vmem:[%s80 + $0x10] sm:$0xff] %vm31, %v61
    %84 = vst.msk [vmem:[%s80 + $0x18] sm:$0xff] %vm31, %v63
    %85 = vst.msk [vmem:[%s80 + $0x20] sm:$0xff] %vm31, %v65
    %86 = vst.msk [vmem:[%s80 + $0x28] sm:$0xff] %vm31, %v67
    %87 = vst.msk [vmem:[%s80 + $0x30] sm:$0xff] %vm31, %v69
    %88 = vst.msk [vmem:[%s80 + $0x38] sm:$0xff] %vm31, %v71
    %v89 = vld [vmem:[#allocation2 + $0x8] sm:$0xff]
    %v90 = vld [vmem:[#allocation2 + $0x18] sm:$0xff]
    %v91 = vld [vmem:[#allocation2 + $0x28] sm:$0xff]
    %v92 = vld [vmem:[#allocation2 + $0x38] sm:$0xff]
    %v93 = vld [vmem:[#allocation2 + $0x48] sm:$0xff]
    %v94 = vld [vmem:[#allocation2 + $0x58] sm:$0xff]
    %v95 = vld [vmem:[#allocation2 + $0x68] sm:$0xff]
    %v96 = vld [vmem:[#allocation2 + $0x78] sm:$0xff]
    %s97 = scalar_lea.vmem [#allocation5], 128
    %98 = vst.msk [vmem:[%s97] sm:$0xff] %vm31, %v89
    %99 = vst.msk [vmem:[%s97 + $0x8] sm:$0xff] %vm31, %v90
    %100 = vst.msk [vmem:[%s97 + $0x10] sm:$0xff] %vm31, %v91
    %101 = vst.msk [vmem:[%s97 + $0x18] sm:$0xff] %vm31, %v92
    %102 = vst.msk [vmem:[%s97 + $0x20] sm:$0xff] %vm31, %v93
    %103 = vst.msk [vmem:[%s97 + $0x28] sm:$0xff] %vm31, %v94
    %104 = vst.msk [vmem:[%s97 + $0x30] sm:$0xff] %vm31, %v95
    %105 = vst.msk [vmem:[%s97 + $0x38] sm:$0xff] %vm31, %v96
    %v106 = vld [vmem:[#allocation2 + $0x8] sm:$0xff]
    %v107 = vld [vmem:[#allocation2 + $0x18] sm:$0xff]
    %v108 = vld [vmem:[#allocation2 + $0x28] sm:$0xff]
    %v109 = vld [vmem:[#allocation2 + $0x38] sm:$0xff]
    %v110 = vld [vmem:[#allocation2 + $0x48] sm:$0xff]
    %v111 = vld [vmem:[#allocation2 + $0x58] sm:$0xff]
    %v112 = vld [vmem:[#allocation2 + $0x68] sm:$0xff]
    %v113 = vld [vmem:[#allocation2 + $0x78] sm:$0xff]
    %122 = vrot.lane.b32.xlu0 %v106, 120
    %v123 = vpop.permute.xlu0 %122
    %124 = vrot.lane.b32.xlu0 %v107, 120
    %v125 = vpop.permute.xlu0 %124
    %126 = vrot.lane.b32.xlu0 %v108, 120
    %v127 = vpop.permute.xlu0 %126
    %128 = vrot.lane.b32.xlu0 %v109, 120
    %v129 = vpop.permute.xlu0 %128
    %130 = vrot.lane.b32.xlu0 %v110, 120
    %v131 = vpop.permute.xlu0 %130
    %132 = vrot.lane.b32.xlu0 %v111, 120
    %v133 = vpop.permute.xlu0 %132
    %134 = vrot.lane.b32.xlu0 %v112, 120
    %v135 = vpop.permute.xlu0 %134
    %136 = vrot.lane.b32.xlu0 %v113, 120
    %v137 = vpop.permute.xlu0 %136
    %s146 = scalar_lea.vmem [#allocation5], 192
    %147 = vst.msk [vmem:[%s146] sm:$0xff] %vm31, %v123
    %148 = vst.msk [vmem:[%s146 + $0x8] sm:$0xff] %vm31, %v125
    %149 = vst.msk [vmem:[%s146 + $0x10] sm:$0xff] %vm31, %v127
    %150 = vst.msk [vmem:[%s146 + $0x18] sm:$0xff] %vm31, %v129
    %151 = vst.msk [vmem:[%s146 + $0x20] sm:$0xff] %vm31, %v131
    %152 = vst.msk [vmem:[%s146 + $0x28] sm:$0xff] %vm31, %v133
    %153 = vst.msk [vmem:[%s146 + $0x30] sm:$0xff] %vm31, %v135
    %154 = vst.msk [vmem:[%s146 + $0x38] sm:$0xff] %vm31, %v137
    // Predicated region
    $region10: #{tpu_custom_call.1} parent=1 // pred_check
      _
    $region11: #{tpu_custom_call.1} parent=1 // pred_check_branch
      %156 = sbr.rel (0) target = $region13
    $region12: #{tpu_custom_call.1} parent=1 // pred_region
      %s158 = ssub.s32 4096, 4096
      %159 = vsyncadd [#allocation4], %s158
      %s160 = sshll.u32 [#allocation5], 4
      %s161 = int_to_ptr.vmem [resolvable:$true] %s160
      %166 = dma.vmem_to_hbm [thread:$0]  %s161, 4096, %s1, [#allocation4], 128, 128, 8
    $region13: #{tpu_custom_call.1} parent=1 // pred_fallthru
      _
    // Predicated region
    $region14: #{tpu_custom_call.1} parent=1 // pred_check
      _
    $region15: #{tpu_custom_call.1} parent=1 // pred_check_branch
      %168 = sbr.rel (0) target = $region17
    $region16: #{tpu_custom_call.1} parent=1 // pred_region
      %169 = dma.done [#allocation4], 4096
    $region17: #{tpu_custom_call.1} parent=1 // pred_fallthru
      _
    %170 = vsyncpa [#allocation3], 1
    %171 = vsyncpa [#allocation4], 1

</llo_original>
